<compile_context>
chip_gen: v5e
topology: v5e:2x2
jax: 0.10.0
libtpu: 0.0.40
codegen_flags: <defaults>
</compile_context>

<pallas_src>
import math
import functools

import jax
import jax.numpy as jnp
from jax import lax
from jax.experimental import pallas as pl
from jax.experimental.pallas import tpu as pltpu


def _mlp_kernel(x_ref, w1_ref, b1_ref, w2_ref, b2_ref, o_ref, *,
                slab, approximate_gelu):
    # x_ref:  (Bb, IN,  TN)  spatial tile, features on sublanes, spatial on lanes
    # w1_ref: (HID, IN)      fc1.weight (PyTorch layout), VMEM-resident
    # b1_ref: (HID, 1)
    # w2_ref: (OUT, HID)     fc2.weight
    # b2_ref: (OUT, 1)
    # o_ref:  (Bb, OUT, TN)  lane-dense output tile
    Bb, _, TN = x_ref.shape
    n_slabs = TN // slab

    w1 = w1_ref[...]
    b1 = b1_ref[...]
    w2 = w2_ref[...]
    b2 = b2_ref[...]
    inv_sqrt2 = 1.0 / math.sqrt(2.0)

    # Statically-unrolled loop over (batch rows x lane slabs).  Static offsets
    # keep every slice a zero-cost aligned view and bound the live range of the
    # f32 intermediate to (HID, slab) = 16 vregs at slab=512.
    for b in range(Bb):
        for s in range(n_slabs):
            lo = s * slab
            x = x_ref[b, :, lo:lo + slab]                       # (IN, slab)
            h = jnp.dot(w1, x, preferred_element_type=jnp.float32) + b1
            if approximate_gelu:
                # tanh form -> EUP slot (frees the VALU); ~1e-3 off erf GELU.
                h = jax.nn.gelu(h, approximate=True)
            else:
                # Exact GELU (PyTorch nn.GELU default erf formulation).
                h = 0.5 * h * (1.0 + lax.erf(h * inv_sqrt2))
            o = jnp.dot(w2, h.astype(w2.dtype),
                        preferred_element_type=jnp.float32) + b2
            o_ref[b, :, lo:lo + slab] = o.astype(o_ref.dtype)


def _choose_tiling(B, HW, tile_n_req):
    """Pick (tile_n, HW_pad, Bb, B_pad, slab) per the perf-review heuristics."""
    lane_hw = pl.cdiv(HW, 128) * 128
    tile_n = max(128, min(tile_n_req, lane_hw))
    # v7x shards "parallel" grid axes across 2 TensorCores: when B == 1 make
    # sure there are at least 2 spatial tiles so neither core sits idle.
    if B == 1 and lane_hw >= 256:
        tile_n = min(tile_n, max(128, (lane_hw // 2) // 128 * 128))
    HW_pad = pl.cdiv(HW, tile_n) * tile_n
    n_sp = HW_pad // tile_n

    # Fold batch rows into one block when the spatial extent is small so each
    # grid step still moves ~4K lanes (bigger DMAs, fewer 0.35us steps) ...
    target_lanes = 4096
    Bb = max(1, min(B, 8, target_lanes // tile_n))
    # ... but keep at least 2 total grid steps (megacore / v7x 2 TCs).
    if B > 1 and pl.cdiv(B, Bb) * n_sp < 2:
        Bb = max(1, pl.cdiv(B, 2))
    B_pad = pl.cdiv(B, Bb) * Bb

    # In-kernel lane-slab width: <= 512 lanes, must divide tile_n.
    slab = tile_n
    for cand in (512, 256, 128):
        if tile_n > cand and tile_n % cand == 0:
            slab = cand
            break
    return tile_n, HW_pad, Bb, B_pad, slab


@functools.partial(
    jax.jit, static_argnames=("tile_n", "approximate_gelu", "out_layout"))
def mlp_forward(x_nchw, w1, b1, w2, b2, *, tile_n=2048,
                approximate_gelu=False, out_layout="nhwc"):
    """x_nchw: (B, C, H, W).  w1: (hidden, C), w2: (out, hidden) (PyTorch layout).

    Returns NHWC (B, H, W, out_features) by default, matching MLP.forward;
    out_layout="nchw" skips the final transpose pass.
    """
    B, C, H, W = x_nchw.shape
    hidden = w1.shape[0]
    out_features = w2.shape[0]
    HW = H * W

    # Flatten spatial onto the lane axis WITHOUT transposing the input.
    x3d = x_nchw.reshape(B, C, HW)

    tn, HW_pad, Bb, B_pad, slab = _choose_tiling(B, HW, tile_n)
    if (B_pad != B) or (HW_pad != HW):
        x3d = jnp.pad(x3d, ((0, B_pad - B), (0, 0), (0, HW_pad - HW)))

    b1_2d = b1.reshape(hidden, 1)
    b2_2d = b2.reshape(out_features, 1)

    grid = (B_pad // Bb, HW_pad // tn)

    kernel = functools.partial(_mlp_kernel, slab=slab,
                               approximate_gelu=approximate_gelu)

    out3d = pl.pallas_call(
        kernel,
        out_shape=jax.ShapeDtypeStruct((B_pad, out_features, HW_pad), x3d.dtype),
        grid_spec=pltpu.PrefetchScalarGridSpec(
            num_scalar_prefetch=0,
            grid=grid,
            in_specs=[
                pl.BlockSpec((Bb, C, tn), lambda b, j: (b, 0, j)),
                # Constant index_maps: weights/biases fetched once, VMEM
                # resident across the whole grid (no per-step re-fetch).
                pl.BlockSpec((hidden, C), lambda b, j: (0, 0)),
                pl.BlockSpec((hidden, 1), lambda b, j: (0, 0)),
                pl.BlockSpec((out_features, hidden), lambda b, j: (0, 0)),
                pl.BlockSpec((out_features, 1), lambda b, j: (0, 0)),
            ],
            out_specs=pl.BlockSpec((Bb, out_features, tn),
                                   lambda b, j: (b, 0, j)),
        ),
        # No vmem_limit_bytes: actual usage is tiny (<2 MiB/step), the default
        # scoped limit already has ample headroom on v5e/v6e/v7x.
        compiler_params=pltpu.CompilerParams(
            dimension_semantics=("parallel", "parallel")),
    )(x3d, w1, b1_2d, w2, b2_2d)

    # Drop batch/spatial padding.
    out3d = out3d[:B, :, :HW]

    if out_layout == "nchw":
        # Skip the extra HBM read+write transpose pass when the consumer
        # accepts channel-first output.
        return out3d.reshape(B, out_features, H, W)

    # PyTorch MLP.forward returns NHWC: permute the small channel-first result
    # with XLA.  (Not fused into the kernel: a (TN, 4) output block would make
    # the kernel's stores lane-sparse, which is worse.)
    return jnp.transpose(out3d, (0, 2, 1)).reshape(B, H, W, out_features)


def _init_params(key, in_features, hidden_features, out_features, dtype=jnp.float32):
    """Deterministic init mimicking nn.Linear's uniform(-1/sqrt(fan_in), ...).

    Weights are stored in PyTorch nn.Linear layout: (out_dim, in_dim).
    """
    k1, k2, k3, k4 = jax.random.split(key, 4)
    bound1 = 1.0 / math.sqrt(in_features)
    bound2 = 1.0 / math.sqrt(hidden_features)
    w1 = jax.random.uniform(k1, (hidden_features, in_features), dtype,
                            minval=-bound1, maxval=bound1)
    b1 = jax.random.uniform(k2, (hidden_features,), dtype,
                            minval=-bound1, maxval=bound1)
    w2 = jax.random.uniform(k3, (out_features, hidden_features), dtype,
                            minval=-bound2, maxval=bound2)
    b2 = jax.random.uniform(k4, (out_features,), dtype,
                            minval=-bound2, maxval=bound2)
    return w1, b1, w2, b2


if __name__ == "__main__":
    key = jax.random.PRNGKey(0)
    kx, kp = jax.random.split(key)

    B, C, H, W = 2, 4, 16, 16           # NCHW input, in_features = C = 4
    in_features = C
    hidden_features = 32
    out_features = in_features          # out_features defaults to in_features

    x = jax.random.normal(kx, (B, C, H, W), dtype=jnp.float32)
    w1, b1, w2, b2 = _init_params(kp, in_features, hidden_features, out_features)

    out = mlp_forward(x, w1, b1, w2, b2)
    jax.block_until_ready(out)

    # Pure-JAX reference (eval-mode dropout = identity, exact erf GELU).
    xr = jnp.transpose(x, (0, 2, 3, 1))
    h_ref = xr @ w1.T + b1
    h_ref = 0.5 * h_ref * (1.0 + lax.erf(h_ref / math.sqrt(2.0)))
    ref = h_ref @ w2.T + b2
    assert out.shape == (B, H, W, out_features)
    assert jnp.allclose(out, ref, atol=1e-4, rtol=1e-4)

    # Also exercise the transpose-free channel-first path.
    out_cf = mlp_forward(x, w1, b1, w2, b2, out_layout="nchw")
    jax.block_until_ready(out_cf)
    assert jnp.allclose(jnp.transpose(out_cf, (0, 2, 3, 1)), ref,
                        atol=1e-4, rtol=1e-4)

    print("KERNEL_OK")
</pallas_src>

<mosaic_0001>
module attributes {stable_mosaic.version = 11 : i64} {
  func.func @_mlp_kernel(%arg0: i32, %arg1: i32, %arg2: memref<1x4x256xf32, #tpu.memory_space<vmem>>, %arg3: memref<32x4xf32, #tpu.memory_space<vmem>>, %arg4: memref<32x1xf32, #tpu.memory_space<vmem>>, %arg5: memref<4x32xf32, #tpu.memory_space<vmem>>, %arg6: memref<4x1xf32, #tpu.memory_space<vmem>>, %arg7: memref<1x4x256xf32, #tpu.memory_space<vmem>>) attributes {dimension_semantics = [#tpu.dimension_semantics<parallel>, #tpu.dimension_semantics<parallel>], iteration_bounds = array<i64: 2, 1>, scalar_prefetch = 0 : i64, scratch_operands = 0 : i64, tpu.core_type = #tpu.core_type<tc>, window_params = [{transform_indices = @transform_0, window_bounds = array<i64: 1, 4, 256>}, {pipeline_mode = #tpu.pipeline_mode<synchronous>, transform_indices = @transform_1, window_bounds = array<i64: 32, 4>}, {pipeline_mode = #tpu.pipeline_mode<synchronous>, transform_indices = @transform_2, window_bounds = array<i64: 32, 1>}, {pipeline_mode = #tpu.pipeline_mode<synchronous>, transform_indices = @transform_3, window_bounds = array<i64: 4, 32>}, {pipeline_mode = #tpu.pipeline_mode<synchronous>, transform_indices = @transform_4, window_bounds = array<i64: 4, 1>}, {transform_indices = @transform_5, window_bounds = array<i64: 1, 4, 256>}]} {
    %c0 = arith.constant 0 : index
    %c0_0 = arith.constant 0 : index
    %0 = vector.load %arg3[%c0, %c0_0] : memref<32x4xf32, #tpu.memory_space<vmem>>, vector<32x4xf32>
    %c0_1 = arith.constant 0 : index
    %c0_2 = arith.constant 0 : index
    %1 = vector.load %arg4[%c0_1, %c0_2] : memref<32x1xf32, #tpu.memory_space<vmem>>, vector<32x1xf32>
    %c0_3 = arith.constant 0 : index
    %c0_4 = arith.constant 0 : index
    %2 = vector.load %arg5[%c0_3, %c0_4] : memref<4x32xf32, #tpu.memory_space<vmem>>, vector<4x32xf32>
    %c0_5 = arith.constant 0 : index
    %c0_6 = arith.constant 0 : index
    %3 = vector.load %arg6[%c0_5, %c0_6] : memref<4x1xf32, #tpu.memory_space<vmem>>, vector<4x1xf32>
    %c0_7 = arith.constant 0 : index
    %c0_8 = arith.constant 0 : index
    %c0_9 = arith.constant 0 : index
    %4 = vector.load %arg2[%c0_7, %c0_8, %c0_9] : memref<1x4x256xf32, #tpu.memory_space<vmem>>, vector<1x4x128xf32>
    %5 = vector.shape_cast %4 : vector<1x4x128xf32> to vector<4x128xf32>
    %cst = arith.constant dense<0.000000e+00> : vector<32x128xf32>
    %6 = tpu.matmul %0, %5, %cst {dimension_numbers = #tpu.dot_dimension_numbers<[1], [0], [0], [1], [0, 0, 1, 1], [], []>} : vector<32x4xf32>, vector<4x128xf32>, vector<32x128xf32> -> vector<32x128xf32>
    %7 = vector.broadcast %1 : vector<32x1xf32> to vector<32x128xf32>
    %8 = arith.addf %6, %7 : vector<32x128xf32>
    %cst_10 = arith.constant 5.000000e-01 : f32
    %9 = vector.broadcast %cst_10 : f32 to vector<32x128xf32>
    %10 = arith.mulf %9, %8 : vector<32x128xf32>
    %cst_11 = arith.constant 0.707106769 : f32
    %11 = vector.broadcast %cst_11 : f32 to vector<32x128xf32>
    %12 = arith.mulf %8, %11 : vector<32x128xf32>
    %13 = math.erf %12 : vector<32x128xf32>
    %cst_12 = arith.constant 1.000000e+00 : f32
    %14 = vector.broadcast %cst_12 : f32 to vector<32x128xf32>
    %15 = arith.addf %14, %13 : vector<32x128xf32>
    %16 = arith.mulf %10, %15 : vector<32x128xf32>
    %cst_13 = arith.constant dense<0.000000e+00> : vector<4x128xf32>
    %17 = tpu.matmul %2, %16, %cst_13 {dimension_numbers = #tpu.dot_dimension_numbers<[1], [0], [0], [1], [0, 0, 1, 1], [], []>} : vector<4x32xf32>, vector<32x128xf32>, vector<4x128xf32> -> vector<4x128xf32>
    %18 = vector.broadcast %3 : vector<4x1xf32> to vector<4x128xf32>
    %19 = arith.addf %17, %18 : vector<4x128xf32>
    %c0_14 = arith.constant 0 : index
    %c0_15 = arith.constant 0 : index
    %c0_16 = arith.constant 0 : index
    %20 = vector.load %arg7[%c0_14, %c0_15, %c0_16] : memref<1x4x256xf32, #tpu.memory_space<vmem>>, vector<1x4x128xf32>
    %21 = vector.shape_cast %20 : vector<1x4x128xf32> to vector<4x128xf32>
    %22 = vector.shape_cast %19 : vector<4x128xf32> to vector<1x4x128xf32>
    tpu.vector_store %arg7[%c0_14, %c0_15, %c0_16], %22 {strides = array<i32>} : memref<1x4x256xf32, #tpu.memory_space<vmem>>, vector<1x4x128xf32>,
    %c0_17 = arith.constant 0 : index
    %c0_18 = arith.constant 0 : index
    %c128 = arith.constant 128 : index
    %23 = vector.load %arg2[%c0_17, %c0_18, %c128] : memref<1x4x256xf32, #tpu.memory_space<vmem>>, vector<1x4x128xf32>
    %24 = vector.shape_cast %23 : vector<1x4x128xf32> to vector<4x128xf32>
    %cst_19 = arith.constant dense<0.000000e+00> : vector<32x128xf32>
    %25 = tpu.matmul %0, %24, %cst_19 {dimension_numbers = #tpu.dot_dimension_numbers<[1], [0], [0], [1], [0, 0, 1, 1], [], []>} : vector<32x4xf32>, vector<4x128xf32>, vector<32x128xf32> -> vector<32x128xf32>
    %26 = vector.broadcast %1 : vector<32x1xf32> to vector<32x128xf32>
    %27 = arith.addf %25, %26 : vector<32x128xf32>
    %cst_20 = arith.constant 5.000000e-01 : f32
    %28 = vector.broadcast %cst_20 : f32 to vector<32x128xf32>
    %29 = arith.mulf %28, %27 : vector<32x128xf32>
    %cst_21 = arith.constant 0.707106769 : f32
    %30 = vector.broadcast %cst_21 : f32 to vector<32x128xf32>
    %31 = arith.mulf %27, %30 : vector<32x128xf32>
    %32 = math.erf %31 : vector<32x128xf32>
    %cst_22 = arith.constant 1.000000e+00 : f32
    %33 = vector.broadcast %cst_22 : f32 to vector<32x128xf32>
    %34 = arith.addf %33, %32 : vector<32x128xf32>
    %35 = arith.mulf %29, %34 : vector<32x128xf32>
    %cst_23 = arith.constant dense<0.000000e+00> : vector<4x128xf32>
    %36 = tpu.matmul %2, %35, %cst_23 {dimension_numbers = #tpu.dot_dimension_numbers<[1], [0], [0], [1], [0, 0, 1, 1], [], []>} : vector<4x32xf32>, vector<32x128xf32>, vector<4x128xf32> -> vector<4x128xf32>
    %37 = vector.broadcast %3 : vector<4x1xf32> to vector<4x128xf32>
    %38 = arith.addf %36, %37 : vector<4x128xf32>
    %c0_24 = arith.constant 0 : index
    %c0_25 = arith.constant 0 : index
    %c128_26 = arith.constant 128 : index
    %39 = vector.load %arg7[%c0_24, %c0_25, %c128_26] : memref<1x4x256xf32, #tpu.memory_space<vmem>>, vector<1x4x128xf32>
    %40 = vector.shape_cast %39 : vector<1x4x128xf32> to vector<4x128xf32>
    %41 = vector.shape_cast %38 : vector<4x128xf32> to vector<1x4x128xf32>
    tpu.vector_store %arg7[%c0_24, %c0_25, %c128_26], %41 {strides = array<i32>} : memref<1x4x256xf32, #tpu.memory_space<vmem>>, vector<1x4x128xf32>,
    return
  }
  func.func @transform_0(%arg0: i32, %arg1: i32) -> (i32, i32, i32) {
    %c0_i32 = arith.constant 0 : i32
    %c0_i32_0 = arith.constant 0 : i32
    return %arg0, %c0_i32, %arg1 : i32, i32, i32
  }
  func.func @transform_1(%arg0: i32, %arg1: i32) -> (i32, i32) {
    %c0_i32 = arith.constant 0 : i32
    %c0_i32_0 = arith.constant 0 : i32
    %c0_i32_1 = arith.constant 0 : i32
    return %c0_i32, %c0_i32_0 : i32, i32
  }
  func.func @transform_2(%arg0: i32, %arg1: i32) -> (i32, i32) {
    %c0_i32 = arith.constant 0 : i32
    %c0_i32_0 = arith.constant 0 : i32
    %c0_i32_1 = arith.constant 0 : i32
    return %c0_i32, %c0_i32_0 : i32, i32
  }
  func.func @transform_3(%arg0: i32, %arg1: i32) -> (i32, i32) {
    %c0_i32 = arith.constant 0 : i32
    %c0_i32_0 = arith.constant 0 : i32
    %c0_i32_1 = arith.constant 0 : i32
    return %c0_i32, %c0_i32_0 : i32, i32
  }
  func.func @transform_4(%arg0: i32, %arg1: i32) -> (i32, i32) {
    %c0_i32 = arith.constant 0 : i32
    %c0_i32_0 = arith.constant 0 : i32
    %c0_i32_1 = arith.constant 0 : i32
    return %c0_i32, %c0_i32_0 : i32, i32
  }
  func.func @transform_5(%arg0: i32, %arg1: i32) -> (i32, i32, i32) {
    %c0_i32 = arith.constant 0 : i32
    %c0_i32_0 = arith.constant 0 : i32
    return %arg0, %c0_i32, %arg1 : i32, i32, i32
  }
}

</mosaic_0001>

<llo_original>
// kernel: mlp_forward.1
$region0: #{mlp_forward.1}
  #allocation0 [shape = 'u32[]', space=smem, size = 0x4, offset = 0x4, fixed_abs, tag = 'smem constant byte address 0x4 - core index']
  #allocation1 [shape = 'u32[72,128]{1,0:T(1,128)}', space=vmem, size = 0x9000, scoped, tag = 'internal scratch']
  %s0 = inlined_call_operand.vmem [shape: f32[2,4,256], index: 0, kind: input, shape index: {}]
  %s1 = inlined_call_operand.vmem [shape: f32[32,4], index: 1, kind: input, shape index: {}]
  %s2 = inlined_call_operand.vmem [shape: f32[32,1], index: 2, kind: input, shape index: {}]
  %s3 = inlined_call_operand.vmem [shape: f32[4,32], index: 3, kind: input, shape index: {}]
  %s4 = inlined_call_operand.vmem [shape: f32[4,1], index: 4, kind: input, shape index: {}]
  %s5 = inlined_call_operand.vmem [shape: f32[2,4,256], index: 5, kind: output, shape index: {}]
  %s6 = sld [smem:[#allocation0]]
  $region53: #{mlp_forward.1} parent=0
    _
  %s8 = ssub.s32 1, %s6
  %s9 = scalar_select 0, %s8, %s6
  loop: start=0, step=1, limit=4
  $region2: #{mlp_forward.1} parent=0 // loop_pre_header
    _
  $region3: #{mlp_forward.1} parent=0 // loop_header
    %s11 = sphi 0, %s15
    %p12 = scmp.ge.s32.totalorder %s11, 4
    %s18 = sphi 0, %s30
    %s19 = sphi 0, %s26
    %s20 = sphi 0, %s18
    %s21 = sphi 0, %s19
    %s22 = sphi 0, %s20
    %s23 = sphi 0, %s21
    %s35 = sphi 0, %s37
    %s38 = sphi 0, %s35
    %s39 = sphi 0, %s38
    %s55 = sphi 0, %s39
    %s59 = sphi 0, %s59
    %s61 = sphi 0, %s59
    %s62 = sphi 0, %s61
    %s76 = sphi 0, %s62
    %s80 = sphi 0, %s80
    %s82 = sphi 0, %s80
    %s83 = sphi 0, %s82
    %s97 = sphi 0, %s83
    %s101 = sphi 0, %s101
    %s103 = sphi 0, %s101
    %s104 = sphi 0, %s103
    %s118 = sphi 0, %s104
    %s122 = sphi 0, %s122
    %s124 = sphi 0, %s122
    %s125 = sphi 0, %s124
    %s139 = sphi 0, %s125
    %s147 = sphi 0, %s149
    %s150 = sphi 0, %s147
    %s151 = sphi 0, %s150
    %s167 = sphi 0, %s151
  $region4: #{mlp_forward.1} parent=0 // loop_header_branch
    %14 = sbr.rel (%p12) target = $region8
  $region5: #{mlp_forward.1} parent=0 // loop_body
    %s16 = ssub.s32 %s11, 1
    %s17 = ssub.s32 %s11, 2
    %s24 = sadd.s32 1, %s19
    %p25 = scmp.ge.s32.totalorder %s24, 1
    %s26 = scalar_select %p25, 0, %s24
    %s27 = sadd.s32 1, %s18
    %s28 = scalar_select %p25, %s27, %s18
    %p29 = scmp.ge.s32.totalorder %s28, 2
    %s30 = scalar_select %p29, 0, %s28
    %s31 = ssub.s32 %s18, %s30
    %s32 = ssub.s32 %s19, %s26
    %s33 = sor.u32 %s31, %s32
    %p34 = scmp.eq.s32.totalorder %s33, 0
    %s36 = sadd.s32 %s35, 1
    %s37 = scalar_select %p34, %s35, %s36
    %p40 = pneg %p34
    %p41 = scmp.eq.s32.totalorder %s11, 1
    %p42 = por %p40, %p41
    %p43 = scmp.ne.s32.totalorder %s35, %s38
    %p44 = scmp.eq.s32.totalorder %s11, 0
    %p45 = por %p43, %p44
    %p46 = scmp.ne.s32.totalorder %s35, %s38
    %p47 = scmp.eq.s32.totalorder %s16, 1
    %p48 = por %p46, %p47
    %p49 = scmp.ne.s32.totalorder %s38, %s39
    %p50 = scmp.eq.s32.totalorder %s16, 0
    %p51 = por %p49, %p50
    %p52 = scmp.ne.s32.totalorder %s38, %s39
    %p53 = scmp.eq.s32.totalorder %s17, 1
    %p54 = por %p52, %p53
    %p56 = scmp.ne.s32.totalorder %s39, %s55
    %p57 = scmp.eq.s32.totalorder %s17, 0
    %p58 = por %p56, %p57
    %s60 = sadd.s32 %s59, 1
    %p63 = scmp.eq.s32.totalorder %s11, 1
    %p64 = scmp.ne.s32.totalorder %s59, %s61
    %p65 = scmp.eq.s32.totalorder %s11, 0
    %p66 = por %p64, %p65
    %p67 = scmp.ne.s32.totalorder %s59, %s61
    %p68 = scmp.eq.s32.totalorder %s16, 1
    %p69 = por %p67, %p68
    %p70 = scmp.ne.s32.totalorder %s61, %s62
    %p71 = scmp.eq.s32.totalorder %s16, 0
    %p72 = por %p70, %p71
    %p73 = scmp.ne.s32.totalorder %s61, %s62
    %p74 = scmp.eq.s32.totalorder %s17, 1
    %p75 = por %p73, %p74
    %p77 = scmp.ne.s32.totalorder %s62, %s76
    %p78 = scmp.eq.s32.totalorder %s17, 0
    %p79 = por %p77, %p78
    %s81 = sadd.s32 %s80, 1
    %p84 = scmp.eq.s32.totalorder %s11, 1
    %p85 = scmp.ne.s32.totalorder %s80, %s82
    %p86 = scmp.eq.s32.totalorder %s11, 0
    %p87 = por %p85, %p86
    %p88 = scmp.ne.s32.totalorder %s80, %s82
    %p89 = scmp.eq.s32.totalorder %s16, 1
    %p90 = por %p88, %p89
    %p91 = scmp.ne.s32.totalorder %s82, %s83
    %p92 = scmp.eq.s32.totalorder %s16, 0
    %p93 = por %p91, %p92
    %p94 = scmp.ne.s32.totalorder %s82, %s83
    %p95 = scmp.eq.s32.totalorder %s17, 1
    %p96 = por %p94, %p95
    %p98 = scmp.ne.s32.totalorder %s83, %s97
    %p99 = scmp.eq.s32.totalorder %s17, 0
    %p100 = por %p98, %p99
    %s102 = sadd.s32 %s101, 1
    %p105 = scmp.eq.s32.totalorder %s11, 1
    %p106 = scmp.ne.s32.totalorder %s101, %s103
    %p107 = scmp.eq.s32.totalorder %s11, 0
    %p108 = por %p106, %p107
    %p109 = scmp.ne.s32.totalorder %s101, %s103
    %p110 = scmp.eq.s32.totalorder %s16, 1
    %p111 = por %p109, %p110
    %p112 = scmp.ne.s32.totalorder %s103, %s104
    %p113 = scmp.eq.s32.totalorder %s16, 0
    %p114 = por %p112, %p113
    %p115 = scmp.ne.s32.totalorder %s103, %s104
    %p116 = scmp.eq.s32.totalorder %s17, 1
    %p117 = por %p115, %p116
    %p119 = scmp.ne.s32.totalorder %s104, %s118
    %p120 = scmp.eq.s32.totalorder %s17, 0
    %p121 = por %p119, %p120
    %s123 = sadd.s32 %s122, 1
    %p126 = scmp.eq.s32.totalorder %s11, 1
    %p127 = scmp.ne.s32.totalorder %s122, %s124
    %p128 = scmp.eq.s32.totalorder %s11, 0
    %p129 = por %p127, %p128
    %p130 = scmp.ne.s32.totalorder %s122, %s124
    %p131 = scmp.eq.s32.totalorder %s16, 1
    %p132 = por %p130, %p131
    %p133 = scmp.ne.s32.totalorder %s124, %s125
    %p134 = scmp.eq.s32.totalorder %s16, 0
    %p135 = por %p133, %p134
    %p136 = scmp.ne.s32.totalorder %s124, %s125
    %p137 = scmp.eq.s32.totalorder %s17, 1
    %p138 = por %p136, %p137
    %p140 = scmp.ne.s32.totalorder %s125, %s139
    %p141 = scmp.eq.s32.totalorder %s17, 0
    %p142 = por %p140, %p141
    %s143 = ssub.s32 %s18, %s30
    %s144 = ssub.s32 %s19, %s26
    %s145 = sor.u32 %s143, %s144
    %p146 = scmp.eq.s32.totalorder %s145, 0
    %s148 = sadd.s32 %s147, 1
    %s149 = scalar_select %p146, %s147, %s148
    %p152 = pneg %p146
    %p153 = scmp.eq.s32.totalorder %s11, 1
    %p154 = por %p152, %p153
    %p155 = scmp.ne.s32.totalorder %s147, %s150
    %p156 = scmp.eq.s32.totalorder %s11, 0
    %p157 = por %p155, %p156
    %p158 = scmp.ne.s32.totalorder %s147, %s150
    %p159 = scmp.eq.s32.totalorder %s16, 1
    %p160 = por %p158, %p159
    %p161 = scmp.ne.s32.totalorder %s150, %s151
    %p162 = scmp.eq.s32.totalorder %s16, 0
    %p163 = por %p161, %p162
    %p164 = scmp.ne.s32.totalorder %s150, %s151
    %p165 = scmp.eq.s32.totalorder %s17, 1
    %p166 = por %p164, %p165
    %p168 = scmp.ne.s32.totalorder %s151, %s167
    %p169 = scmp.eq.s32.totalorder %s17, 0
    %p170 = por %p168, %p169
    %p171 = scmp.le.s32.totalorder 1, %s11
    %p172 = scmp.lt.s32.totalorder %s11, 3
    %p173 = pnand %p171, %p172
    %p174 = pneg %p173
    // Predicated region
    $region9: #{mlp_forward.1} parent=5 // pred_check
      _
    $region10: #{mlp_forward.1} parent=5 // pred_check_branch
      %176 = sbr.rel (%p173) target = $region12
    $region11: #{mlp_forward.1} parent=5 // pred_region
      %s177 = ssub.s32 %s11, 1
      // Predicated region
      $region13: #{mlp_forward.1} parent=11 // pred_check
        %p178 = pneg %p72
      $region14: #{mlp_forward.1} parent=11 // pred_check_branch
        %180 = sbr.rel (%p178) target = $region16
      $region15: #{mlp_forward.1} parent=11 // pred_region
        _
      $region16: #{mlp_forward.1} parent=11 // pred_fallthru
        _
      // Predicated region
      $region17: #{mlp_forward.1} parent=11 // pred_check
        %p181 = pneg %p93
      $region18: #{mlp_forward.1} parent=11 // pred_check_branch
        %183 = sbr.rel (%p181) target = $region20
      $region19: #{mlp_forward.1} parent=11 // pred_region
        _
      $region20: #{mlp_forward.1} parent=11 // pred_fallthru
        _
      // Predicated region
      $region21: #{mlp_forward.1} parent=11 // pred_check
        %p184 = pneg %p114
      $region22: #{mlp_forward.1} parent=11 // pred_check_branch
        %186 = sbr.rel (%p184) target = $region24
      $region23: #{mlp_forward.1} parent=11 // pred_region
        _
      $region24: #{mlp_forward.1} parent=11 // pred_fallthru
        _
      // Predicated region
      $region25: #{mlp_forward.1} parent=11 // pred_check
        %p187 = pneg %p135
      $region26: #{mlp_forward.1} parent=11 // pred_check_branch
        %189 = sbr.rel (%p187) target = $region28
      $region27: #{mlp_forward.1} parent=11 // pred_region
        _
      $region28: #{mlp_forward.1} parent=11 // pred_fallthru
        _
    $region12: #{mlp_forward.1} parent=5 // pred_fallthru
      _
    %p190 = scmp.lt.s32.totalorder %s11, 2
    // Predicated region
    $region29: #{mlp_forward.1} parent=5 // pred_check
      %p191 = pneg %p190
    $region30: #{mlp_forward.1} parent=5 // pred_check_branch
      %193 = sbr.rel (%p191) target = $region32
    $region31: #{mlp_forward.1} parent=5 // pred_region
      // Predicated region
      $region33: #{mlp_forward.1} parent=31 // pred_check
        %p194 = pneg %p45
      $region34: #{mlp_forward.1} parent=31 // pred_check_branch
        %196 = sbr.rel (%p194) target = $region36
      $region35: #{mlp_forward.1} parent=31 // pred_region
        %s197 = smul.u32 2, %s19
        %p198 = scmp.lt.s32.totalorder %s18, 1
        %s199 = scalar_select %p198, %s18, 1
        %p200 = scmp.lt.s32.totalorder %s197, 1
        %s201 = scalar_select %p200, %s197, 1
        %s202 = smul.addr %s199, 2
        %s203 = sadd.s32 %s201, %s202
        %s204 = smul.addr %s203, 4
        %s205 = scalar_lea.vmem %s0, %s204
        %s206 = smul.u32 2, %s19
      $region36: #{mlp_forward.1} parent=31 // pred_fallthru
        _
    $region32: #{mlp_forward.1} parent=5 // pred_fallthru
      _
    %p207 = scmp.le.s32.totalorder 1, %s11
    %p208 = scmp.lt.s32.totalorder %s11, 3
    %p209 = pnand %p207, %p208
    %p210 = pneg %p209
    // Predicated region
    $region37: #{mlp_forward.1} parent=5 // pred_check
      _
    $region38: #{mlp_forward.1} parent=5 // pred_check_branch
      %212 = sbr.rel (%p209) target = $region40
    $region39: #{mlp_forward.1} parent=5 // pred_region
      %s213 = ssub.s32 %s11, 1
      %s214 = smul.u32 2, %s21
      %p215 = scmp.lt.s32.totalorder %s20, 1
      %s216 = scalar_select %p215, %s20, 1
      %p217 = scmp.lt.s32.totalorder %s214, 1
      %s218 = scalar_select %p217, %s214, 1
      %s219 = smul.addr %s216, 2
      %s220 = sadd.s32 %s218, %s219
      %s221 = smul.addr %s220, 4
      %s222 = scalar_lea.vmem %s0, %s221
      %p223 = pneg %p51
      %p224 = pneg %p48
      %p225 = pneg %p72
      %p226 = pneg %p69
      %p227 = pneg %p93
      %p228 = pneg %p90
      %p229 = pneg %p114
      %p230 = pneg %p111
      %p231 = pneg %p135
      %p232 = pneg %p132
      %p233 = pneg %p163
      %p234 = pneg %p160
      %s235 = smul.u32 2, %s21
      %p236 = scmp.lt.s32.totalorder %s20, 1
      %s237 = scalar_select %p236, %s20, 1
      %p238 = scmp.lt.s32.totalorder %s235, 1
      %s239 = scalar_select %p238, %s235, 1
      %s240 = smul.addr %s237, 2
      %s241 = sadd.s32 %s239, %s240
      %s242 = smul.addr %s241, 4
      %s243 = scalar_lea.vmem %s5, %s242
      %s244 = smul.u32 2, %s21
      %p245 = scmp.lt.s32.totalorder %s20, 1
      %s246 = scalar_select %p245, %s20, 1
      %p247 = scmp.lt.s32.totalorder %s244, 1
      %s248 = scalar_select %p247, %s244, 1
      %s249 = smul.addr %s246, 2
      %s250 = sadd.s32 %s248, %s249
      %s251 = smul.addr %s250, 4
      %s252 = scalar_lea.vmem %s0, %s251
      %s253 = smul.u32 2, %s21
      %s254 = smul.u32 2, %s21
      %p255 = scmp.lt.s32.totalorder %s20, 1
      %s256 = scalar_select %p255, %s20, 1
      %p257 = scmp.lt.s32.totalorder %s254, 1
      %s258 = scalar_select %p257, %s254, 1
      %s259 = smul.addr %s256, 2
      %s260 = sadd.s32 %s258, %s259
      %s261 = smul.addr %s260, 4
      %s262 = scalar_lea.vmem %s5, %s261
      %s263 = smul.u32 2, %s21
      %v264 = vld [vmem:[%s1] sm:$0xff]
      %v265 = vld [vmem:[%s1 + $0x8] sm:$0xff]
      %v266 = vld [vmem:[%s1 + $0x10] sm:$0xff]
      %v267 = vld [vmem:[%s1 + $0x18] sm:$0xff]
      %v268 = vld [vmem:[%s2] sm:$0xff]
      %v269 = vld [vmem:[%s2 + $0x8] sm:$0xff]
      %v270 = vld [vmem:[%s2 + $0x10] sm:$0xff]
      %v271 = vld [vmem:[%s2 + $0x18] sm:$0xff]
      %v272 = vld [vmem:[%s3] sm:$0xf]
      %v273 = vld [vmem:[%s4] sm:$0xf]
      %v274 = vld [vmem:[%s252] sm:$0xf]
      %276 = vset.pattern.permute.xlu0 0
      %277 = vperm.xlu0 %276, %v268
      %v278 = vpop.permute.xlu0 %277
      %281 = vset.pattern.permute.xlu0 0
      %282 = vperm.xlu0 %281, %v269
      %v283 = vpop.permute.xlu0 %282
      %286 = vset.pattern.permute.xlu0 0
      %287 = vperm.xlu0 %286, %v270
      %v288 = vpop.permute.xlu0 %287
      %291 = vset.pattern.permute.xlu0 0
      %292 = vperm.xlu0 %291, %v271
      %v293 = vpop.permute.xlu0 %292
      %vm295 = vcmask 31744
      %v297 = vsel %vm295, %v264, 0
      %v300 = vsel %vm295, %v265, 0
      %v303 = vsel %vm295, %v266, 0
      %v306 = vsel %vm295, %v267, 0
      %vm308 = vcmask 1043456
      %v310 = vsel %vm308, %v274, 0
      %312 = vmatpush.msra.mxu0 0.0
      %313 = vmatpush.msra.mxu0 0.0
      %314 = vmatpush.msra.mxu0 0.0
      %315 = vmatpush.msra.mxu0 0.0
      %316 = vmatpush.msra.mxu0 0.0
      %317 = vmatpush.msra.mxu0 0.0
      %318 = vmatpush.msra.mxu0 0.0
      %319 = vmatpush.msra.mxu0 0.0
      %320 = vmatpush.msra.mxu0 0.0
      %321 = vmatpush.msra.mxu0 0.0
      %322 = vmatpush.msra.mxu0 0.0
      %323 = vmatpush.msra.mxu0 0.0
      %324 = vmatpush.msra.mxu0 0.0
      %325 = vmatpush.msra.mxu0 0.0
      %326 = vmatpush.msra.mxu0 0.0
      %327 = vmatpush.msra.mxu0 %v310
      %328 = vmatmul.f32.gmra.mxu0 %v297
      %v329 = vpop.f32.mrf.mxu0
      %v330 = vadd.f32 %v278, %v329
      %331 = vmatmul.f32.gmra.mxu0 %v300
      %v332 = vpop.f32.mrf.mxu0
      %v333 = vadd.f32 %v283, %v332
      %334 = vmatmul.f32.gmra.mxu0 %v303
      %v335 = vpop.f32.mrf.mxu0
      %v336 = vadd.f32 %v288, %v335
      %337 = vmatmul.f32.gmra.mxu0 %v306
      %v338 = vpop.f32.mrf.mxu0
      %v339 = vadd.f32 %v293, %v338
      %340 = vdwg.mxu0
      %v341 = vmul.f32 %v330, 0.5
      %v342 = vmul.f32 %v333, 0.5
      %v343 = vmul.f32 %v336, 0.5
      %v344 = vmul.f32 %v339, 0.5
      %v345 = vmul.f32 %v330, 0.70710677
      %v346 = vmul.f32 %v333, 0.70710677
      %v347 = vmul.f32 %v336, 0.70710677
      %v348 = vmul.f32 %v339, 0.70710677
      %v349 = vmul.f32 %v345, %v345
      %v350 = vmin.f32 16.0, %v349
      %v351 = vmul.f32 %v350, 2.1237322e-06
      %v352 = vadd.f32 %v351, 0.00028619796
      %v353 = vmul.f32 %v350, %v352
      %v354 = vadd.f32 %v353, 0.0036580483
      %v355 = vmul.f32 %v350, %v354
      %v356 = vadd.f32 %v355, 0.05243302
      %v357 = vmul.f32 %v350, %v356
      %v358 = vadd.f32 %v357, 0.18741608
      %v359 = vmul.f32 %v350, %v358
      %v360 = vadd.f32 %v359, 1.1283791
      %v361 = vmul.f32 %v345, %v360
      %v362 = vmul.f32 %v350, 3.8918573e-05
      %v363 = vadd.f32 %v362, 0.001143296
      %v364 = vmul.f32 %v350, %v363
      %v365 = vadd.f32 %v364, 0.014752088
      %v366 = vmul.f32 %v350, %v365
      %v367 = vadd.f32 %v366, 0.112945676
      %v368 = vmul.f32 %v350, %v367
      %v369 = vadd.f32 %v368, 0.4994258
      %v370 = vmul.f32 %v350, %v369
      %v371 = vadd.f32 %v370, 1.0
      %v372 = vrcp.pop %v371
      %v373 = vmul.f32 %v371, %v372
      %v374 = vsub.f32 1.0, %v373
      %v375 = vmul.f32 %v372, %v374
      %v376 = vadd.f32 %v372, %v375
      %vm377 = vweird.f32 %v371
      %vm378 = vweird.f32 %v372
      %vm379 = vmor %vm377, %vm378
      %v380 = vsel %vm379, %v372, %v376
      %v381 = vand.u32 2147483647, %v371
      %vm382 = vcmp.eq.f32.partialorder %v381, 8.507059e+37
      %v383 = vand.u32 %v371, 2147483648
      %v384 = vor.u32 1.1754944e-38, %v383
      %v385 = vsel %vm382, %v384, %v380
      %v386 = vmul.f32 %v361, %v385
      %v387 = vmin.f32 %v386, 1.0
      %v388 = vmax.f32 %v387, -1.0
      %v389 = vmul.f32 %v346, %v346
      %v390 = vmin.f32 16.0, %v389
      %v391 = vmul.f32 %v390, 2.1237322e-06
      %v392 = vadd.f32 %v391, 0.00028619796
      %v393 = vmul.f32 %v390, %v392
      %v394 = vadd.f32 %v393, 0.0036580483
      %v395 = vmul.f32 %v390, %v394
      %v396 = vadd.f32 %v395, 0.05243302
      %v397 = vmul.f32 %v390, %v396
      %v398 = vadd.f32 %v397, 0.18741608
      %v399 = vmul.f32 %v390, %v398
      %v400 = vadd.f32 %v399, 1.1283791
      %v401 = vmul.f32 %v346, %v400
      %v402 = vmul.f32 %v390, 3.8918573e-05
      %v403 = vadd.f32 %v402, 0.001143296
      %v404 = vmul.f32 %v390, %v403
      %v405 = vadd.f32 %v404, 0.014752088
      %v406 = vmul.f32 %v390, %v405
      %v407 = vadd.f32 %v406, 0.112945676
      %v408 = vmul.f32 %v390, %v407
      %v409 = vadd.f32 %v408, 0.4994258
      %v410 = vmul.f32 %v390, %v409
      %v411 = vadd.f32 %v410, 1.0
      %v412 = vrcp.pop %v411
      %v413 = vmul.f32 %v411, %v412
      %v414 = vsub.f32 1.0, %v413
      %v415 = vmul.f32 %v412, %v414
      %v416 = vadd.f32 %v412, %v415
      %vm417 = vweird.f32 %v411
      %vm418 = vweird.f32 %v412
      %vm419 = vmor %vm417, %vm418
      %v420 = vsel %vm419, %v412, %v416
      %v421 = vand.u32 2147483647, %v411
      %vm422 = vcmp.eq.f32.partialorder %v421, 8.507059e+37
      %v423 = vand.u32 %v411, 2147483648
      %v424 = vor.u32 1.1754944e-38, %v423
      %v425 = vsel %vm422, %v424, %v420
      %v426 = vmul.f32 %v401, %v425
      %v427 = vmin.f32 %v426, 1.0
      %v428 = vmax.f32 %v427, -1.0
      %v429 = vmul.f32 %v347, %v347
      %v430 = vmin.f32 16.0, %v429
      %v431 = vmul.f32 %v430, 2.1237322e-06
      %v432 = vadd.f32 %v431, 0.00028619796
      %v433 = vmul.f32 %v430, %v432
      %v434 = vadd.f32 %v433, 0.0036580483
      %v435 = vmul.f32 %v430, %v434
      %v436 = vadd.f32 %v435, 0.05243302
      %v437 = vmul.f32 %v430, %v436
      %v438 = vadd.f32 %v437, 0.18741608
      %v439 = vmul.f32 %v430, %v438
      %v440 = vadd.f32 %v439, 1.1283791
      %v441 = vmul.f32 %v347, %v440
      %v442 = vmul.f32 %v430, 3.8918573e-05
      %v443 = vadd.f32 %v442, 0.001143296
      %v444 = vmul.f32 %v430, %v443
      %v445 = vadd.f32 %v444, 0.014752088
      %v446 = vmul.f32 %v430, %v445
      %v447 = vadd.f32 %v446, 0.112945676
      %v448 = vmul.f32 %v430, %v447
      %v449 = vadd.f32 %v448, 0.4994258
      %v450 = vmul.f32 %v430, %v449
      %v451 = vadd.f32 %v450, 1.0
      %v452 = vrcp.pop %v451
      %v453 = vmul.f32 %v451, %v452
      %v454 = vsub.f32 1.0, %v453
      %v455 = vmul.f32 %v452, %v454
      %v456 = vadd.f32 %v452, %v455
      %vm457 = vweird.f32 %v451
      %vm458 = vweird.f32 %v452
      %vm459 = vmor %vm457, %vm458
      %v460 = vsel %vm459, %v452, %v456
      %v461 = vand.u32 2147483647, %v451
      %vm462 = vcmp.eq.f32.partialorder %v461, 8.507059e+37
      %v463 = vand.u32 %v451, 2147483648
      %v464 = vor.u32 1.1754944e-38, %v463
      %v465 = vsel %vm462, %v464, %v460
      %v466 = vmul.f32 %v441, %v465
      %v467 = vmin.f32 %v466, 1.0
      %v468 = vmax.f32 %v467, -1.0
      %v469 = vmul.f32 %v348, %v348
      %v470 = vmin.f32 16.0, %v469
      %v471 = vmul.f32 %v470, 2.1237322e-06
      %v472 = vadd.f32 %v471, 0.00028619796
      %v473 = vmul.f32 %v470, %v472
      %v474 = vadd.f32 %v473, 0.0036580483
      %v475 = vmul.f32 %v470, %v474
      %v476 = vadd.f32 %v475, 0.05243302
      %v477 = vmul.f32 %v470, %v476
      %v478 = vadd.f32 %v477, 0.18741608
      %v479 = vmul.f32 %v470, %v478
      %v480 = vadd.f32 %v479, 1.1283791
      %v481 = vmul.f32 %v348, %v480
      %v482 = vmul.f32 %v470, 3.8918573e-05
      %v483 = vadd.f32 %v482, 0.001143296
      %v484 = vmul.f32 %v470, %v483
      %v485 = vadd.f32 %v484, 0.014752088
      %v486 = vmul.f32 %v470, %v485
      %v487 = vadd.f32 %v486, 0.112945676
      %v488 = vmul.f32 %v470, %v487
      %v489 = vadd.f32 %v488, 0.4994258
      %v490 = vmul.f32 %v470, %v489
      %v491 = vadd.f32 %v490, 1.0
      %v492 = vrcp.pop %v491
      %v493 = vmul.f32 %v491, %v492
      %v494 = vsub.f32 1.0, %v493
      %v495 = vmul.f32 %v492, %v494
      %v496 = vadd.f32 %v492, %v495
      %vm497 = vweird.f32 %v491
      %vm498 = vweird.f32 %v492
      %vm499 = vmor %vm497, %vm498
      %v500 = vsel %vm499, %v492, %v496
      %v501 = vand.u32 2147483647, %v491
      %vm502 = vcmp.eq.f32.partialorder %v501, 8.507059e+37
      %v503 = vand.u32 %v491, 2147483648
      %v504 = vor.u32 1.1754944e-38, %v503
      %v505 = vsel %vm502, %v504, %v500
      %v506 = vmul.f32 %v481, %v505
      %v507 = vmin.f32 %v506, 1.0
      %v508 = vmax.f32 %v507, -1.0
      %v509 = vadd.f32 %v388, 1.0
      %v510 = vadd.f32 %v428, 1.0
      %v511 = vadd.f32 %v468, 1.0
      %v512 = vadd.f32 %v508, 1.0
      %v513 = vmul.f32 %v341, %v509
      %v514 = vmul.f32 %v342, %v510
      %v515 = vmul.f32 %v343, %v511
      %v516 = vmul.f32 %v344, %v512
      %518 = vset.pattern.permute.xlu0 0
      %519 = vperm.xlu0 %518, %v273
      %v520 = vpop.permute.xlu0 %519
      %vm522 = vcmask 261120
      %v524 = vsel %vm522, %v272, 0
      %526 = vmatpush.msra.mxu0 0.0
      %527 = vmatpush.msra.mxu0 0.0
      %528 = vmatpush.msra.mxu0 0.0
      %529 = vmatpush.msra.mxu0 0.0
      %530 = vmatpush.msra.mxu0 0.0
      %531 = vmatpush.msra.mxu0 0.0
      %532 = vmatpush.msra.mxu0 0.0
      %533 = vmatpush.msra.mxu0 0.0
      %534 = vmatpush.msra.mxu0 0.0
      %535 = vmatpush.msra.mxu0 0.0
      %536 = vmatpush.msra.mxu0 0.0
      %537 = vmatpush.msra.mxu0 0.0
      %538 = vmatpush.msra.mxu0 %v516
      %539 = vmatpush.msra.mxu0 %v515
      %540 = vmatpush.msra.mxu0 %v514
      %541 = vmatpush.msra.mxu0 %v513
      %542 = vmatmul.f32.gmra.mxu0 %v524
      %v543 = vpop.f32.mrf.mxu0
      %v544 = vadd.f32 %v520, %v543
      %545 = vdwg.mxu0
      %546 = vst [vmem:[%s262] sm:$0xf] %v544
      %v547 = vld [vmem:[%s252 + $0x4] sm:$0xf]
      %v549 = vsel %vm308, %v547, 0
      %551 = vmatpush.msra.mxu0 0.0
      %552 = vmatpush.msra.mxu0 0.0
      %553 = vmatpush.msra.mxu0 0.0
      %554 = vmatpush.msra.mxu0 0.0
      %555 = vmatpush.msra.mxu0 0.0
      %556 = vmatpush.msra.mxu0 0.0
      %557 = vmatpush.msra.mxu0 0.0
      %558 = vmatpush.msra.mxu0 0.0
      %559 = vmatpush.msra.mxu0 0.0
      %560 = vmatpush.msra.mxu0 0.0
      %561 = vmatpush.msra.mxu0 0.0
      %562 = vmatpush.msra.mxu0 0.0
      %563 = vmatpush.msra.mxu0 0.0
      %564 = vmatpush.msra.mxu0 0.0
      %565 = vmatpush.msra.mxu0 0.0
      %566 = vmatpush.msra.mxu0 %v549
      %567 = vmatmul.f32.gmra.mxu0 %v297
      %v568 = vpop.f32.mrf.mxu0
      %v569 = vadd.f32 %v278, %v568
      %570 = vmatmul.f32.gmra.mxu0 %v300
      %v571 = vpop.f32.mrf.mxu0
      %v572 = vadd.f32 %v283, %v571
      %573 = vmatmul.f32.gmra.mxu0 %v303
      %v574 = vpop.f32.mrf.mxu0
      %v575 = vadd.f32 %v288, %v574
      %576 = vmatmul.f32.gmra.mxu0 %v306
      %v577 = vpop.f32.mrf.mxu0
      %v578 = vadd.f32 %v293, %v577
      %579 = vdwg.mxu0
      %v580 = vmul.f32 %v569, 0.5
      %v581 = vmul.f32 %v572, 0.5
      %v582 = vmul.f32 %v575, 0.5
      %v583 = vmul.f32 %v578, 0.5
      %v584 = vmul.f32 %v569, 0.70710677
      %v585 = vmul.f32 %v572, 0.70710677
      %v586 = vmul.f32 %v575, 0.70710677
      %v587 = vmul.f32 %v578, 0.70710677
      %v588 = vmul.f32 %v584, %v584
      %v589 = vmin.f32 16.0, %v588
      %v590 = vmul.f32 %v589, 2.1237322e-06
      %v591 = vadd.f32 %v590, 0.00028619796
      %v592 = vmul.f32 %v589, %v591
      %v593 = vadd.f32 %v592, 0.0036580483
      %v594 = vmul.f32 %v589, %v593
      %v595 = vadd.f32 %v594, 0.05243302
      %v596 = vmul.f32 %v589, %v595
      %v597 = vadd.f32 %v596, 0.18741608
      %v598 = vmul.f32 %v589, %v597
      %v599 = vadd.f32 %v598, 1.1283791
      %v600 = vmul.f32 %v584, %v599
      %v601 = vmul.f32 %v589, 3.8918573e-05
      %v602 = vadd.f32 %v601, 0.001143296
      %v603 = vmul.f32 %v589, %v602
      %v604 = vadd.f32 %v603, 0.014752088
      %v605 = vmul.f32 %v589, %v604
      %v606 = vadd.f32 %v605, 0.112945676
      %v607 = vmul.f32 %v589, %v606
      %v608 = vadd.f32 %v607, 0.4994258
      %v609 = vmul.f32 %v589, %v608
      %v610 = vadd.f32 %v609, 1.0
      %v611 = vrcp.pop %v610
      %v612 = vmul.f32 %v610, %v611
      %v613 = vsub.f32 1.0, %v612
      %v614 = vmul.f32 %v611, %v613
      %v615 = vadd.f32 %v611, %v614
      %vm616 = vweird.f32 %v610
      %vm617 = vweird.f32 %v611
      %vm618 = vmor %vm616, %vm617
      %v619 = vsel %vm618, %v611, %v615
      %v620 = vand.u32 2147483647, %v610
      %vm621 = vcmp.eq.f32.partialorder %v620, 8.507059e+37
      %v622 = vand.u32 %v610, 2147483648
      %v623 = vor.u32 1.1754944e-38, %v622
      %v624 = vsel %vm621, %v623, %v619
      %v625 = vmul.f32 %v600, %v624
      %v626 = vmin.f32 %v625, 1.0
      %v627 = vmax.f32 %v626, -1.0
      %v628 = vmul.f32 %v585, %v585
      %v629 = vmin.f32 16.0, %v628
      %v630 = vmul.f32 %v629, 2.1237322e-06
      %v631 = vadd.f32 %v630, 0.00028619796
      %v632 = vmul.f32 %v629, %v631
      %v633 = vadd.f32 %v632, 0.0036580483
      %v634 = vmul.f32 %v629, %v633
      %v635 = vadd.f32 %v634, 0.05243302
      %v636 = vmul.f32 %v629, %v635
      %v637 = vadd.f32 %v636, 0.18741608
      %v638 = vmul.f32 %v629, %v637
      %v639 = vadd.f32 %v638, 1.1283791
      %v640 = vmul.f32 %v585, %v639
      %v641 = vmul.f32 %v629, 3.8918573e-05
      %v642 = vadd.f32 %v641, 0.001143296
      %v643 = vmul.f32 %v629, %v642
      %v644 = vadd.f32 %v643, 0.014752088
      %v645 = vmul.f32 %v629, %v644
      %v646 = vadd.f32 %v645, 0.112945676
      %v647 = vmul.f32 %v629, %v646
      %v648 = vadd.f32 %v647, 0.4994258
      %v649 = vmul.f32 %v629, %v648
      %v650 = vadd.f32 %v649, 1.0
      %v651 = vrcp.pop %v650
      %v652 = vmul.f32 %v650, %v651
      %v653 = vsub.f32 1.0, %v652
      %v654 = vmul.f32 %v651, %v653
      %v655 = vadd.f32 %v651, %v654
      %vm656 = vweird.f32 %v650
      %vm657 = vweird.f32 %v651
      %vm658 = vmor %vm656, %vm657
      %v659 = vsel %vm658, %v651, %v655
      %v660 = vand.u32 2147483647, %v650
      %vm661 = vcmp.eq.f32.partialorder %v660, 8.507059e+37
      %v662 = vand.u32 %v650, 2147483648
      %v663 = vor.u32 1.1754944e-38, %v662
      %v664 = vsel %vm661, %v663, %v659
      %v665 = vmul.f32 %v640, %v664
      %v666 = vmin.f32 %v665, 1.0
      %v667 = vmax.f32 %v666, -1.0
      %v668 = vmul.f32 %v586, %v586
      %v669 = vmin.f32 16.0, %v668
      %v670 = vmul.f32 %v669, 2.1237322e-06
      %v671 = vadd.f32 %v670, 0.00028619796
      %v672 = vmul.f32 %v669, %v671
      %v673 = vadd.f32 %v672, 0.0036580483
      %v674 = vmul.f32 %v669, %v673
      %v675 = vadd.f32 %v674, 0.05243302
      %v676 = vmul.f32 %v669, %v675
      %v677 = vadd.f32 %v676, 0.18741608
      %v678 = vmul.f32 %v669, %v677
      %v679 = vadd.f32 %v678, 1.1283791
      %v680 = vmul.f32 %v586, %v679
      %v681 = vmul.f32 %v669, 3.8918573e-05
      %v682 = vadd.f32 %v681, 0.001143296
      %v683 = vmul.f32 %v669, %v682
      %v684 = vadd.f32 %v683, 0.014752088
      %v685 = vmul.f32 %v669, %v684
      %v686 = vadd.f32 %v685, 0.112945676
      %v687 = vmul.f32 %v669, %v686
      %v688 = vadd.f32 %v687, 0.4994258
      %v689 = vmul.f32 %v669, %v688
      %v690 = vadd.f32 %v689, 1.0
      %v691 = vrcp.pop %v690
      %v692 = vmul.f32 %v690, %v691
      %v693 = vsub.f32 1.0, %v692
      %v694 = vmul.f32 %v691, %v693
      %v695 = vadd.f32 %v691, %v694
      %vm696 = vweird.f32 %v690
      %vm697 = vweird.f32 %v691
      %vm698 = vmor %vm696, %vm697
      %v699 = vsel %vm698, %v691, %v695
      %v700 = vand.u32 2147483647, %v690
      %vm701 = vcmp.eq.f32.partialorder %v700, 8.507059e+37
      %v702 = vand.u32 %v690, 2147483648
      %v703 = vor.u32 1.1754944e-38, %v702
      %v704 = vsel %vm701, %v703, %v699
      %v705 = vmul.f32 %v680, %v704
      %v706 = vmin.f32 %v705, 1.0
      %v707 = vmax.f32 %v706, -1.0
      %v708 = vmul.f32 %v587, %v587
      %v709 = vmin.f32 16.0, %v708
      %v710 = vmul.f32 %v709, 2.1237322e-06
      %v711 = vadd.f32 %v710, 0.00028619796
      %v712 = vmul.f32 %v709, %v711
      %v713 = vadd.f32 %v712, 0.0036580483
      %v714 = vmul.f32 %v709, %v713
      %v715 = vadd.f32 %v714, 0.05243302
      %v716 = vmul.f32 %v709, %v715
      %v717 = vadd.f32 %v716, 0.18741608
      %v718 = vmul.f32 %v709, %v717
      %v719 = vadd.f32 %v718, 1.1283791
      %v720 = vmul.f32 %v587, %v719
      %v721 = vmul.f32 %v709, 3.8918573e-05
      %v722 = vadd.f32 %v721, 0.001143296
      %v723 = vmul.f32 %v709, %v722
      %v724 = vadd.f32 %v723, 0.014752088
      %v725 = vmul.f32 %v709, %v724
      %v726 = vadd.f32 %v725, 0.112945676
      %v727 = vmul.f32 %v709, %v726
      %v728 = vadd.f32 %v727, 0.4994258
      %v729 = vmul.f32 %v709, %v728
      %v730 = vadd.f32 %v729, 1.0
      %v731 = vrcp.pop %v730
      %v732 = vmul.f32 %v730, %v731
      %v733 = vsub.f32 1.0, %v732
      %v734 = vmul.f32 %v731, %v733
      %v735 = vadd.f32 %v731, %v734
      %vm736 = vweird.f32 %v730
      %vm737 = vweird.f32 %v731
      %vm738 = vmor %vm736, %vm737
      %v739 = vsel %vm738, %v731, %v735
      %v740 = vand.u32 2147483647, %v730
      %vm741 = vcmp.eq.f32.partialorder %v740, 8.507059e+37
      %v742 = vand.u32 %v730, 2147483648
      %v743 = vor.u32 1.1754944e-38, %v742
      %v744 = vsel %vm741, %v743, %v739
      %v745 = vmul.f32 %v720, %v744
      %v746 = vmin.f32 %v745, 1.0
      %v747 = vmax.f32 %v746, -1.0
      %v748 = vadd.f32 %v627, 1.0
      %v749 = vadd.f32 %v667, 1.0
      %v750 = vadd.f32 %v707, 1.0
      %v751 = vadd.f32 %v747, 1.0
      %v752 = vmul.f32 %v580, %v748
      %v753 = vmul.f32 %v581, %v749
      %v754 = vmul.f32 %v582, %v750
      %v755 = vmul.f32 %v583, %v751
      %756 = vmatpush.msra.mxu0 0.0
      %757 = vmatpush.msra.mxu0 0.0
      %758 = vmatpush.msra.mxu0 0.0
      %759 = vmatpush.msra.mxu0 0.0
      %760 = vmatpush.msra.mxu0 0.0
      %761 = vmatpush.msra.mxu0 0.0
      %762 = vmatpush.msra.mxu0 0.0
      %763 = vmatpush.msra.mxu0 0.0
      %764 = vmatpush.msra.mxu0 0.0
      %765 = vmatpush.msra.mxu0 0.0
      %766 = vmatpush.msra.mxu0 0.0
      %767 = vmatpush.msra.mxu0 0.0
      %768 = vmatpush.msra.mxu0 %v755
      %769 = vmatpush.msra.mxu0 %v754
      %770 = vmatpush.msra.mxu0 %v753
      %771 = vmatpush.msra.mxu0 %v752
      %772 = vmatmul.f32.gmra.mxu0 %v524
      %v773 = vpop.f32.mrf.mxu0
      %v774 = vadd.f32 %v520, %v773
      %775 = vdwg.mxu0
      %776 = vst [vmem:[%s262 + $0x4] sm:$0xf] %v774
      %s777 = smul.u32 2, %s21
      %p778 = scmp.lt.s32.totalorder %s20, 1
      %s779 = scalar_select %p778, %s20, 1
      %p780 = scmp.lt.s32.totalorder %s777, 1
      %s781 = scalar_select %p780, %s777, 1
      %s782 = smul.addr %s779, 2
      %s783 = sadd.s32 %s781, %s782
      %s784 = smul.addr %s783, 4
      %s785 = scalar_lea.vmem %s5, %s784
      // Predicated region
      $region41: #{mlp_forward.1} parent=39 // pred_check
        %p786 = pneg %p160
      $region42: #{mlp_forward.1} parent=39 // pred_check_branch
        %788 = sbr.rel (%p786) target = $region44
      $region43: #{mlp_forward.1} parent=39 // pred_region
        %s789 = smul.u32 2, %s21
      $region44: #{mlp_forward.1} parent=39 // pred_fallthru
        _
    $region40: #{mlp_forward.1} parent=5 // pred_fallthru
      _
    %p790 = scmp.le.s32.totalorder 2, %s11
    // Predicated region
    $region45: #{mlp_forward.1} parent=5 // pred_check
      %p791 = pneg %p790
    $region46: #{mlp_forward.1} parent=5 // pred_check_branch
      %793 = sbr.rel (%p791) target = $region48
    $region47: #{mlp_forward.1} parent=5 // pred_region
      %s794 = ssub.s32 %s11, 2
      // Predicated region
      $region49: #{mlp_forward.1} parent=47 // pred_check
        %p795 = pneg %p166
      $region50: #{mlp_forward.1} parent=47 // pred_check_branch
        %797 = sbr.rel (%p795) target = $region52
      $region51: #{mlp_forward.1} parent=47 // pred_region
        %s798 = smul.u32 2, %s23
        %p799 = scmp.lt.s32.totalorder %s22, 1
        %s800 = scalar_select %p799, %s22, 1
        %p801 = scmp.lt.s32.totalorder %s798, 1
        %s802 = scalar_select %p801, %s798, 1
        %s803 = smul.addr %s800, 2
        %s804 = sadd.s32 %s802, %s803
        %s805 = smul.addr %s804, 4
        %s806 = scalar_lea.vmem %s5, %s805
      $region52: #{mlp_forward.1} parent=47 // pred_fallthru
        _
    $region48: #{mlp_forward.1} parent=5 // pred_fallthru
      _
  $region6: #{mlp_forward.1} parent=0 // loop_footer
    %s15 = sadd.s32 1, %s11
  $region7: #{mlp_forward.1} parent=0 // loop_footer_branch
    %10 = sbr.rel target = $region3
  $region8: #{mlp_forward.1} parent=0 // loop_exit
    _

</llo_original>
